<compile_context>
chip_gen: v5e
topology: v5e:2x2
jax: 0.10.0
libtpu: 0.0.40
codegen_flags: <defaults>
</compile_context>

<pallas_src>
import jax
import jax.numpy as jnp
from jax.experimental import pallas as pl
from jax.experimental.pallas import tpu as pltpu

HIDDEN_DIM = 2      # hidden_dim (fixed by the hard-coded 2x2 weights)
N_FEATURES = 2      # n_features
SUB = 8             # sublanes of one f32 vreg
LANES = 128         # lanes of one f32 vreg


def encoder_kernel(point_ref, hidden_ref, wb_ref, out_ref):
    """point_ref, hidden_ref: (2,) f32 in SMEM.
    wb_ref: (5, 8, 128) f32 in VMEM; rows 0..3 are per-input weight tiles
            (lane j holds fused weight W[j, k], broadcast across sublanes),
            row 4 is the pre-summed bias tile.
    out_ref: (8, 128) f32 in VMEM; lanes 0..1 of every sublane hold new_hidden."""
    x = point_ref[0]
    y = point_ref[1]
    h0 = hidden_ref[0]
    h1 = hidden_ref[1]
    pretan = (wb_ref[4]
              + x * wb_ref[0]
              + y * wb_ref[1]
              + h0 * wb_ref[2]
              + h1 * wb_ref[3])            # (8, 128), pure VPU FMAs
    out_ref[...] = jnp.tanh(pretan)         # EUP, full unmasked store


def build_encoder_constants(w_ih, b_ih, w_hh, b_hh):
    """Run ONCE: fuse weights/biases and pre-broadcast into vreg-shaped tiles.
    Returns wb of shape (5, 8, 128):
      wb[k, :, j] = W_fused[j, k]   for k in 0..3 (inputs x, y, h0, h1), j in 0..1
      wb[4, :, j] = b_ih[j] + b_hh[j]
    Zero elsewhere (exact: tanh(0)=0 lanes are sliced off by the wrapper)."""
    w_fused = jnp.concatenate([w_ih, w_hh], axis=1).astype(jnp.float32)   # (2, 4)
    b_fused = (b_ih + b_hh).astype(jnp.float32)                           # (2,)

    wb = jnp.zeros((5, SUB, LANES), jnp.float32)
    for k in range(4):
        row = jnp.zeros((LANES,), jnp.float32).at[:HIDDEN_DIM].set(w_fused[:, k])
        wb = wb.at[k].set(jnp.broadcast_to(row, (SUB, LANES)))
    brow = jnp.zeros((LANES,), jnp.float32).at[:HIDDEN_DIM].set(b_fused)
    wb = wb.at[4].set(jnp.broadcast_to(brow, (SUB, LANES)))
    return wb


@jax.jit
def encoder_forward(point, hidden, wb):
    """point: (2,) [x, y]; hidden: (2,); wb: prebuilt (5,8,128) constants.
    Returns (None, new_hidden) matching the PyTorch Encoder.forward."""
    out = pl.pallas_call(
        encoder_kernel,
        out_shape=jax.ShapeDtypeStruct((SUB, LANES), jnp.float32),
        in_specs=[
            pl.BlockSpec(memory_space=pltpu.MemorySpace.SMEM),   # point scalars
            pl.BlockSpec(memory_space=pltpu.MemorySpace.SMEM),   # hidden scalars
            pl.BlockSpec(memory_space=pltpu.MemorySpace.VMEM),   # fused weight/bias tiles
        ],
        out_specs=pl.BlockSpec(memory_space=pltpu.MemorySpace.VMEM),
    )(point.astype(jnp.float32), hidden.astype(jnp.float32), wb)
    new_hidden = out[0, :HIDDEN_DIM]
    return None, new_hidden


def _reference(point, hidden, w_ih, b_ih, w_hh, b_hh):
    pretan = (w_ih @ point.astype(jnp.float32) + b_ih
              + w_hh @ hidden.astype(jnp.float32) + b_hh)
    return jnp.tanh(pretan)


if __name__ == "__main__":
    key = jax.random.PRNGKey(0)
    k_pt, k_hid = jax.random.split(key, 2)

    # fixed parameters from the module __init__ (f64 in torch -> f32 here)
    w_ih = jnp.array([[0.6627, -0.4245], [0.5373, 0.2294]], dtype=jnp.float32)
    b_ih = jnp.array([0.4954, 0.6533], dtype=jnp.float32)
    w_hh = jnp.array([[-0.4015, -0.5385], [-0.1956, -0.6835]], dtype=jnp.float32)
    b_hh = jnp.array([-0.3565, -0.2904], dtype=jnp.float32)

    # one-time constant preparation (hoisted out of the per-call path)
    wb = build_encoder_constants(w_ih, b_ih, w_hh, b_hh)

    # inputs: one (x, y) point and one hidden state of size 2
    point = jax.random.normal(k_pt, (2,), jnp.float32)
    hidden = jax.random.normal(k_hid, (HIDDEN_DIM,), jnp.float32)

    _, new_hidden = encoder_forward(point, hidden, wb)
    jax.block_until_ready(new_hidden)

    ref_hidden = _reference(point, hidden, w_ih, b_ih, w_hh, b_hh)
    assert jnp.allclose(new_hidden, ref_hidden, atol=1e-5, rtol=1e-5), (
        new_hidden, ref_hidden)
    assert new_hidden.shape == (HIDDEN_DIM,)

    print("KERNEL_OK")
</pallas_src>

<mosaic_0001>
module attributes {stable_mosaic.version = 11 : i64} {
  func.func @encoder_kernel(%arg0: memref<2xf32, #tpu.memory_space<smem>>, %arg1: memref<2xf32, #tpu.memory_space<smem>>, %arg2: memref<5x8x128xf32, #tpu.memory_space<vmem>>, %arg3: memref<8x128xf32, #tpu.memory_space<vmem>>) attributes {dimension_semantics = [], scalar_prefetch = 0 : i64, scratch_operands = 0 : i64, tpu.core_type = #tpu.core_type<tc>} {
    %c0 = arith.constant 0 : index
    %0 = memref.load %arg0[%c0] : memref<2xf32, #tpu.memory_space<smem>>
    %c1 = arith.constant 1 : index
    %1 = memref.load %arg0[%c1] : memref<2xf32, #tpu.memory_space<smem>>
    %c0_0 = arith.constant 0 : index
    %2 = memref.load %arg1[%c0_0] : memref<2xf32, #tpu.memory_space<smem>>
    %c1_1 = arith.constant 1 : index
    %3 = memref.load %arg1[%c1_1] : memref<2xf32, #tpu.memory_space<smem>>
    %c4 = arith.constant 4 : index
    %c0_2 = arith.constant 0 : index
    %c0_3 = arith.constant 0 : index
    %4 = vector.load %arg2[%c4, %c0_2, %c0_3] : memref<5x8x128xf32, #tpu.memory_space<vmem>>, vector<1x8x128xf32>
    %5 = vector.shape_cast %4 : vector<1x8x128xf32> to vector<8x128xf32>
    %c0_4 = arith.constant 0 : index
    %c0_5 = arith.constant 0 : index
    %c0_6 = arith.constant 0 : index
    %6 = vector.load %arg2[%c0_4, %c0_5, %c0_6] : memref<5x8x128xf32, #tpu.memory_space<vmem>>, vector<1x8x128xf32>
    %7 = vector.shape_cast %6 : vector<1x8x128xf32> to vector<8x128xf32>
    %8 = vector.broadcast %0 : f32 to vector<8x128xf32>
    %9 = arith.mulf %8, %7 : vector<8x128xf32>
    %10 = arith.addf %5, %9 : vector<8x128xf32>
    %c1_7 = arith.constant 1 : index
    %c0_8 = arith.constant 0 : index
    %c0_9 = arith.constant 0 : index
    %11 = vector.load %arg2[%c1_7, %c0_8, %c0_9] : memref<5x8x128xf32, #tpu.memory_space<vmem>>, vector<1x8x128xf32>
    %12 = vector.shape_cast %11 : vector<1x8x128xf32> to vector<8x128xf32>
    %13 = vector.broadcast %1 : f32 to vector<8x128xf32>
    %14 = arith.mulf %13, %12 : vector<8x128xf32>
    %15 = arith.addf %10, %14 : vector<8x128xf32>
    %c2 = arith.constant 2 : index
    %c0_10 = arith.constant 0 : index
    %c0_11 = arith.constant 0 : index
    %16 = vector.load %arg2[%c2, %c0_10, %c0_11] : memref<5x8x128xf32, #tpu.memory_space<vmem>>, vector<1x8x128xf32>
    %17 = vector.shape_cast %16 : vector<1x8x128xf32> to vector<8x128xf32>
    %18 = vector.broadcast %2 : f32 to vector<8x128xf32>
    %19 = arith.mulf %18, %17 : vector<8x128xf32>
    %20 = arith.addf %15, %19 : vector<8x128xf32>
    %c3 = arith.constant 3 : index
    %c0_12 = arith.constant 0 : index
    %c0_13 = arith.constant 0 : index
    %21 = vector.load %arg2[%c3, %c0_12, %c0_13] : memref<5x8x128xf32, #tpu.memory_space<vmem>>, vector<1x8x128xf32>
    %22 = vector.shape_cast %21 : vector<1x8x128xf32> to vector<8x128xf32>
    %23 = vector.broadcast %3 : f32 to vector<8x128xf32>
    %24 = arith.mulf %23, %22 : vector<8x128xf32>
    %25 = arith.addf %20, %24 : vector<8x128xf32>
    %26 = math.tanh %25 : vector<8x128xf32>
    %c0_14 = arith.constant 0 : index
    %c0_15 = arith.constant 0 : index
    %27 = vector.load %arg3[%c0_14, %c0_15] : memref<8x128xf32, #tpu.memory_space<vmem>>, vector<8x128xf32>
    tpu.vector_store %arg3[%c0_14, %c0_15], %26 {strides = array<i32>} : memref<8x128xf32, #tpu.memory_space<vmem>>, vector<8x128xf32>,
    return
  }
}

</mosaic_0001>

<llo_original>
// kernel: encoder_forward.1
$region0: #{encoder_forward.1}
  #allocation0 [shape = 'u32[]', space=smem, size = 0x4, offset = 0x4, fixed_abs, tag = 'smem constant byte address 0x4 - core index']
  #allocation1 [shape = 'u32[72,128]{1,0:T(1,128)}', space=vmem, size = 0x9000, scoped, tag = 'internal scratch']
  %s0 = inlined_call_operand.hbm [shape: f32[2], index: 0, kind: input, shape index: {}]
  %s1 = inlined_call_operand.hbm [shape: f32[2], index: 1, kind: input, shape index: {}]
  %s2 = inlined_call_operand.hbm [shape: f32[5,8,128], index: 2, kind: input, shape index: {}]
  %s3 = inlined_call_operand.vmem [shape: f32[8,128], index: 3, kind: output, shape index: {}]
  %s4 = sld [smem:[#allocation0]]
  $region34: #{encoder_forward.1} parent=0
    _
  %s6 = ssub.s32 1, %s4
  %s7 = scalar_select 0, %s6, %s4
  $region1: #{encoder_forward.1} parent=0
    #allocation2 [shape = 'u8[512]{0}', space=smem, size = 0x200, scoped, tag = 'input window, operand 0, single buffered']
    #allocation3 [shape = 's32[1]{0}', space=sflag, size = 0x4, scoped, tag = 'scoped memory for encoder_forward.1']
    #allocation4 [shape = 's32[1]{0}', space=sflag, size = 0x4, scoped, tag = 'scoped memory for encoder_forward.1']
    #allocation5 [shape = 'u8[512]{0}', space=smem, size = 0x200, scoped, tag = 'input window, operand 1, single buffered']
    #allocation6 [shape = 's32[1]{0}', space=sflag, size = 0x4, scoped, tag = 'scoped memory for encoder_forward.1']
    #allocation7 [shape = 'u8[20480]{0}', space=vmem, size = 0x5000, scoped, tag = 'input window, operand 2, single buffered']
    %8 = vsyncpa [#allocation4], 0
    %9 = vsyncpa [#allocation6], 0
    %10 = vsyncpa [#allocation3], 0
    // Predicated region
    $region2: #{encoder_forward.1} parent=1 // pred_check
      _
    $region3: #{encoder_forward.1} parent=1 // pred_check_branch
      %12 = sbr.rel (0) target = $region5
    $region4: #{encoder_forward.1} parent=1 // pred_region
      %14 = vsyncadd [#allocation4], 0
      %s16 = sshll.u32 %s0, 4
      %s17 = int_to_ptr.hbm [resolvable:$true] %s16
      %19 = dma.hbm_to_smem %s17, 16, [#allocation2], [#allocation4]
    $region5: #{encoder_forward.1} parent=1 // pred_fallthru
      _
    // Predicated region
    $region6: #{encoder_forward.1} parent=1 // pred_check
      _
    $region7: #{encoder_forward.1} parent=1 // pred_check_branch
      %21 = sbr.rel (0) target = $region9
    $region8: #{encoder_forward.1} parent=1 // pred_region
      %23 = vsyncadd [#allocation6], 0
      %s25 = sshll.u32 %s1, 4
      %s26 = int_to_ptr.hbm [resolvable:$true] %s25
      %28 = dma.hbm_to_smem %s26, 16, [#allocation5], [#allocation6]
    $region9: #{encoder_forward.1} parent=1 // pred_fallthru
      _
    // Predicated region
    $region10: #{encoder_forward.1} parent=1 // pred_check
      _
    $region11: #{encoder_forward.1} parent=1 // pred_check_branch
      %30 = sbr.rel (0) target = $region13
    $region12: #{encoder_forward.1} parent=1 // pred_region
      %32 = vsyncadd [#allocation3], 0
      %s33 = sshll.u32 %s2, 4
      %s34 = int_to_ptr.hbm [resolvable:$true] %s33
      %s35 = sshll.u32 [#allocation7], 4
      %s36 = int_to_ptr.vmem [resolvable:$true] %s35
      %41 = dma.hbm_to_vmem [thread:$0]  %s34, 640, %s36, [#allocation3], 128, 128, 8
    $region13: #{encoder_forward.1} parent=1 // pred_fallthru
      _
    // Predicated region
    $region14: #{encoder_forward.1} parent=1 // pred_check
      _
    $region15: #{encoder_forward.1} parent=1 // pred_check_branch
      %43 = sbr.rel (0) target = $region17
    $region16: #{encoder_forward.1} parent=1 // pred_region
      %45 = dma.done [#allocation4], 16
    $region17: #{encoder_forward.1} parent=1 // pred_fallthru
      _
    // Predicated region
    $region18: #{encoder_forward.1} parent=1 // pred_check
      _
    $region19: #{encoder_forward.1} parent=1 // pred_check_branch
      %47 = sbr.rel (0) target = $region21
    $region20: #{encoder_forward.1} parent=1 // pred_region
      %49 = dma.done [#allocation6], 16
    $region21: #{encoder_forward.1} parent=1 // pred_fallthru
      _
    // Predicated region
    $region22: #{encoder_forward.1} parent=1 // pred_check
      _
    $region23: #{encoder_forward.1} parent=1 // pred_check_branch
      %51 = sbr.rel (0) target = $region25
    $region24: #{encoder_forward.1} parent=1 // pred_region
      %53 = dma.done [#allocation3], 640
    $region25: #{encoder_forward.1} parent=1 // pred_fallthru
      _
    %54 = sfence
    %s55 = sld [smem:[#allocation2]]
    %s56 = sld [smem:[#allocation2 + $0x1]]
    %s57 = sld [smem:[#allocation5]]
    %s58 = sld [smem:[#allocation5 + $0x1]]
    %s59 = scalar_lea.vmem [#allocation7], 32
    %v60 = vld [vmem:[%s59] sm:$0xff]
    %v61 = vld [vmem:[#allocation7] sm:$0xff]
    %v62 = vstv %s55
    %v63 = vmul.f32 %v62, %v61
    %v64 = vadd.f32 %v60, %v63
    %s65 = scalar_lea.vmem [#allocation7], 8
    %v66 = vld [vmem:[%s65] sm:$0xff]
    %v67 = vstv %s56
    %v68 = vmul.f32 %v67, %v66
    %v69 = vadd.f32 %v64, %v68
    %s70 = scalar_lea.vmem [#allocation7], 16
    %v71 = vld [vmem:[%s70] sm:$0xff]
    %v72 = vstv %s57
    %v73 = vmul.f32 %v72, %v71
    %v74 = vadd.f32 %v69, %v73
    %s75 = scalar_lea.vmem [#allocation7], 24
    %v76 = vld [vmem:[%s75] sm:$0xff]
    %v77 = vstv %s58
    %v78 = vmul.f32 %v77, %v76
    %v79 = vadd.f32 %v74, %v78
    %v80 = vtanh.pop %v79
    %81 = vst [vmem:[%s3] sm:$0xff] %v80
    // Predicated region
    $region26: #{encoder_forward.1} parent=1 // pred_check
      _
    $region27: #{encoder_forward.1} parent=1 // pred_check_branch
      %83 = sbr.rel (0) target = $region29
    $region28: #{encoder_forward.1} parent=1 // pred_region
      _
    $region29: #{encoder_forward.1} parent=1 // pred_fallthru
      _
    // Predicated region
    $region30: #{encoder_forward.1} parent=1 // pred_check
      _
    $region31: #{encoder_forward.1} parent=1 // pred_check_branch
      %85 = sbr.rel (0) target = $region33
    $region32: #{encoder_forward.1} parent=1 // pred_region
      _
    $region33: #{encoder_forward.1} parent=1 // pred_fallthru
      _
    %86 = vsyncpa [#allocation3], 1
    %87 = vsyncpa [#allocation4], 1
    %88 = vsyncpa [#allocation6], 1

</llo_original>
